<compile_context>
chip_gen: v7x
topology: tpu7x:2x2x1
jax: 0.10.0
libtpu: 0.0.40
codegen_flags: <defaults>
</compile_context>

<pallas_src>
import functools
import math

import jax
import jax.numpy as jnp
from jax.experimental import pallas as pl
from jax.experimental.pallas import tpu as pltpu


# ----------------------------------------------------------------------------
# Kernels
# ----------------------------------------------------------------------------
def _residual_linear_kernel(x_ref, w_ref, b_ref, o_ref):
    # x_ref: (tile_t, H)   w_ref: (H, H) (bf16)   b_ref: (1, H)   o_ref: (tile_t, H)
    x = x_ref[...]
    y = jnp.dot(x.astype(w_ref.dtype), w_ref[...],
                preferred_element_type=jnp.float32)
    y = y + b_ref[...].astype(jnp.float32)
    # residual add in f32 with the original-precision x
    o_ref[...] = (y + x.astype(jnp.float32)).astype(o_ref.dtype)


def _residual_linear_kernel_ntiled(x_ref, w_ref, b_ref, o_ref, *, tile_n):
    # N-tiled path, tile_n divides H.  The residual is sliced out of the
    # already-resident full-K x tile (lane-aligned: tile_n % 128 == 0), so no
    # duplicate residual stream is DMA'd from HBM.
    # x_ref: (tile_t, H)   w_ref: (H, tile_n)   b_ref: (1, tile_n)
    j = pl.program_id(0)
    y = jnp.dot(x_ref[...].astype(w_ref.dtype), w_ref[...],
                preferred_element_type=jnp.float32)
    y = y + b_ref[...].astype(jnp.float32)
    start = pl.multiple_of(j * tile_n, 128)
    res = x_ref[:, pl.ds(start, tile_n)]
    o_ref[...] = (y + res.astype(jnp.float32)).astype(o_ref.dtype)


def _residual_linear_kernel_ntiled_xr(x_ref, xr_ref, w_ref, b_ref, o_ref):
    # Fallback N-tiled path for H not a multiple of tile_n: an explicit
    # residual slab keeps the partial boundary block in-bounds (no OOB VMEM
    # slice inside the kernel).
    y = jnp.dot(x_ref[...].astype(w_ref.dtype), w_ref[...],
                preferred_element_type=jnp.float32)
    y = y + b_ref[...].astype(jnp.float32)
    o_ref[...] = (y + xr_ref[...].astype(jnp.float32)).astype(o_ref.dtype)


# ----------------------------------------------------------------------------
# Wrapper helpers
# ----------------------------------------------------------------------------
def _round_up(x, m):
    return ((x + m - 1) // m) * m


def _vmem_capacity_bytes():
    """Physical VMEM per core; conservative (v7x = 64 MiB) default on failure."""
    try:
        return int(pltpu.get_tpu_info().vmem_capacity_bytes)
    except Exception:
        return 64 * 1024 * 1024


def _choose_tile_n(h, w_bytes, capacity):
    """Output-column tiling of the (H, H) weight.

    Returns H (full residency, single-buffered) whenever the whole weight fits
    a chip-aware budget (~55% of VMEM: H~4k bf16 on v7x, ~6k on v5e/v6e);
    otherwise the largest 128-multiple slab whose double-buffered copy fits a
    smaller per-slab budget, preferring divisors of H.
    """
    resident_budget = int(capacity * 0.55)
    if h * h * w_bytes <= resident_budget:
        return h
    slab_budget = int(capacity * 0.35)
    tile = (slab_budget // (2 * h * w_bytes)) // 128 * 128
    tile = max(128, min(tile, _round_up(h, 128)))
    if h % 128 == 0:
        while tile > 128 and h % tile != 0:
            tile -= 128
    return tile


# ----------------------------------------------------------------------------
# Wrapper
# ----------------------------------------------------------------------------
def residual_add(x, w, b, *, tile_t=512):
    """Fused out = x @ w + b + x.

    x: (T, H) tokens-major.  w: (H, H) pre-transposed (in, out) so the kernel
    does x @ w directly (ideally bf16 for the MXU).  b: (H,) or (1, H).
    """
    T, H = x.shape
    assert w.shape == (H, H)
    b = jnp.asarray(b).reshape(1, H)

    x_bytes = jnp.dtype(x.dtype).itemsize
    w_bytes = jnp.dtype(w.dtype).itemsize
    b_bytes = jnp.dtype(b.dtype).itemsize
    o_bytes = x_bytes

    capacity = _vmem_capacity_bytes()
    headroom = 6 << 20  # compiler-internal scratch / spill slack

    # --- weight output (N) tiling only if full residency does not fit -------
    tile_n = _choose_tile_n(H, w_bytes, capacity)
    n_n = pl.cdiv(H, tile_n)
    dedup_residual = (n_n > 1) and (H % tile_n == 0)

    def vmem_footprint(tt, single_buffer_const):
        if n_n == 1:
            wbuf = 1 if single_buffer_const else 2
            return (wbuf * H * H * w_bytes + wbuf * H * b_bytes
                    + 2 * tt * H * x_bytes + 2 * tt * H * o_bytes)
        total = (2 * H * tile_n * w_bytes + 2 * tile_n * b_bytes
                 + 2 * tt * H * x_bytes + 2 * tt * tile_n * o_bytes)
        if not dedup_residual:
            total += 2 * tt * tile_n * x_bytes
        return total

    # --- token (M) tiling: big tiles, no host-side padding -------------------
    # The grid uses cdiv; the partial boundary block is masked by Pallas (each
    # output row depends only on its own input row, so garbage tail rows are
    # never written back).
    sub = 16 if x.dtype == jnp.bfloat16 else 8
    tile_t = max(sub, min(_round_up(tile_t, sub), _round_up(T, sub)))
    while tile_t > 256 and vmem_footprint(tile_t, True) + headroom > capacity:
        tile_t = max(sub, _round_up(tile_t // 2, sub))
    n_t = pl.cdiv(T, tile_t)

    # --- compiler hints -------------------------------------------------------
    flops = 2 * T * H * H
    if n_n == 1:
        bytes_accessed = (T * H * x_bytes + H * H * w_bytes + H * b_bytes
                          + T * H * o_bytes)
    else:
        # full-K x operand is re-streamed once per N slab
        bytes_accessed = (n_n * T * H * x_bytes + H * H * w_bytes
                          + H * b_bytes + T * H * o_bytes)
        if not dedup_residual:
            bytes_accessed += T * H * x_bytes  # duplicate residual slab
    cost = pl.CostEstimate(flops=flops, transcendentals=0,
                           bytes_accessed=bytes_accessed)

    out_shape = jax.ShapeDtypeStruct((T, H), x.dtype)

    def call(single_buffer_const):
        vmem_bytes = vmem_footprint(tile_t, single_buffer_const)
        vmem_limit = int(min(capacity, max(32 << 20, vmem_bytes + headroom)))
        params = pltpu.CompilerParams(
            dimension_semantics=("parallel",) if n_n == 1 else ("parallel", "parallel"),
            vmem_limit_bytes=vmem_limit,
        )

        if n_n == 1:
            # Full weight resident in VMEM; grid only over tokens.  Constant-
            # index weight/bias blocks are single-buffered (Buffered(1)).
            if single_buffer_const:
                w_spec = pl.BlockSpec((H, H), lambda i: (0, 0),
                                      pipeline_mode=pl.Buffered(1))
                b_spec = pl.BlockSpec((1, H), lambda i: (0, 0),
                                      pipeline_mode=pl.Buffered(1))
            else:
                w_spec = pl.BlockSpec((H, H), lambda i: (0, 0))
                b_spec = pl.BlockSpec((1, H), lambda i: (0, 0))
            return pl.pallas_call(
                _residual_linear_kernel,
                out_shape=out_shape,
                grid_spec=pltpu.PrefetchScalarGridSpec(
                    num_scalar_prefetch=0,
                    grid=(n_t,),
                    in_specs=[pl.BlockSpec((tile_t, H), lambda i: (i, 0)),
                              w_spec, b_spec],
                    out_specs=pl.BlockSpec((tile_t, H), lambda i: (i, 0)),
                ),
                compiler_params=params,
                cost_estimate=cost,
            )(x, w, b)

        if dedup_residual:
            # N axis outer: each weight slab streams once; residual sliced
            # from the resident full-K x tile (no duplicate x stream).
            kernel = functools.partial(_residual_linear_kernel_ntiled,
                                       tile_n=tile_n)
            return pl.pallas_call(
                kernel,
                out_shape=out_shape,
                grid_spec=pltpu.PrefetchScalarGridSpec(
                    num_scalar_prefetch=0,
                    grid=(n_n, n_t),
                    in_specs=[pl.BlockSpec((tile_t, H), lambda j, i: (i, 0)),
                              pl.BlockSpec((H, tile_n), lambda j, i: (0, j)),
                              pl.BlockSpec((1, tile_n), lambda j, i: (0, j))],
                    out_specs=pl.BlockSpec((tile_t, tile_n), lambda j, i: (i, j)),
                ),
                compiler_params=params,
                cost_estimate=cost,
            )(x, w, b)

        # H not a multiple of tile_n (and weight too big to be resident):
        # explicit residual slab keeps the partial N boundary block in-bounds.
        return pl.pallas_call(
            _residual_linear_kernel_ntiled_xr,
            out_shape=out_shape,
            grid_spec=pltpu.PrefetchScalarGridSpec(
                num_scalar_prefetch=0,
                grid=(n_n, n_t),
                in_specs=[pl.BlockSpec((tile_t, H), lambda j, i: (i, 0)),
                          pl.BlockSpec((tile_t, tile_n), lambda j, i: (i, j)),
                          pl.BlockSpec((H, tile_n), lambda j, i: (0, j)),
                          pl.BlockSpec((1, tile_n), lambda j, i: (0, j))],
                out_specs=pl.BlockSpec((tile_t, tile_n), lambda j, i: (i, j)),
            ),
            compiler_params=params,
            cost_estimate=cost,
        )(x, x, w, b)

    try:
        return call(single_buffer_const=True)
    except Exception:
        # Older jax without BlockSpec(pipeline_mode=...): fall back to the
        # default double-buffered constant blocks.
        return call(single_buffer_const=False)


class ResidualAddPallas:
    """Mirrors ResidualAdd(fn) with fn = Linear(hidden, hidden).

    ResidualAdd is generic over `fn`; only the Linear instantiation used in
    net_EGPT is fused here.
    """

    def __init__(self, hidden, key, compute_dtype=jnp.bfloat16):
        kw, kb = jax.random.split(key)
        bound = 1.0 / math.sqrt(hidden)
        # PyTorch Linear stores weight as (out, in); keep it pre-transposed
        # as (in, out) so the kernel does x @ w directly.
        self.w = jax.random.uniform(kw, (hidden, hidden), jnp.float32, -bound, bound)
        self.b = jax.random.uniform(kb, (1, hidden), jnp.float32, -bound, bound)
        self.w_mxu = self.w.astype(compute_dtype)  # bf16 copy fed to the MXU

    def __call__(self, x):
        # x: (batch, seq, hidden) -> (tokens, hidden) for the kernel.
        # (If the surrounding model tolerates bf16 activations, pass bf16 x to
        # halve the dominant HBM streams; f32 kept here to match the spec.)
        B, S, H = x.shape
        out = residual_add(x.reshape(B * S, H), self.w_mxu, self.b)
        return out.reshape(B, S, H)


if __name__ == "__main__":
    key = jax.random.PRNGKey(0)
    k_x, k_p = jax.random.split(key)

    batch, seq, hidden = 2, 8, 32
    x = jax.random.normal(k_x, (batch, seq, hidden), jnp.float32)

    module = ResidualAddPallas(hidden, k_p)
    out = jax.block_until_ready(module(x))

    # reference: fn(x) + x with the same bf16-matmul / f32-accumulate recipe
    x2d = x.reshape(-1, hidden)
    ref = (jnp.dot(x2d.astype(jnp.bfloat16), module.w_mxu,
                   preferred_element_type=jnp.float32)
           + module.b + x2d).reshape(batch, seq, hidden)

    assert out.shape == x.shape
    assert jnp.allclose(out, ref, atol=1e-2, rtol=1e-2)

    print("KERNEL_OK")
</pallas_src>

<mosaic_0001>
module attributes {stable_mosaic.version = 11 : i64} {
  func.func @_residual_linear_kernel(%arg0: i32, %arg1: memref<16x32xf32, #tpu.memory_space<vmem>>, %arg2: memref<32x32xbf16, #tpu.memory_space<vmem>>, %arg3: memref<1x32xf32, #tpu.memory_space<vmem>>, %arg4: memref<16x32xf32, #tpu.memory_space<vmem>>) attributes {dimension_semantics = [#tpu.dimension_semantics<parallel>], iteration_bounds = array<i64: 1>, scalar_prefetch = 0 : i64, scratch_operands = 0 : i64, tpu.core_type = #tpu.core_type<tc>, window_params = [{transform_indices = @transform_0, window_bounds = array<i64: 16, 32>}, {pipeline_mode = #tpu.pipeline_mode<synchronous>, transform_indices = @transform_1, window_bounds = array<i64: 32, 32>}, {pipeline_mode = #tpu.pipeline_mode<synchronous>, transform_indices = @transform_2, window_bounds = array<i64: 1, 32>}, {transform_indices = @transform_3, window_bounds = array<i64: 16, 32>}]} {
    %c0 = arith.constant 0 : index
    %c0_0 = arith.constant 0 : index
    %0 = vector.load %arg1[%c0, %c0_0] : memref<16x32xf32, #tpu.memory_space<vmem>>, vector<16x32xf32>
    %1 = arith.truncf %0 : vector<16x32xf32> to vector<16x32xbf16>
    %c0_1 = arith.constant 0 : index
    %c0_2 = arith.constant 0 : index
    %2 = vector.load %arg2[%c0_1, %c0_2] : memref<32x32xbf16, #tpu.memory_space<vmem>>, vector<32x32xbf16>
    %cst = arith.constant dense<0.000000e+00> : vector<16x32xf32>
    %3 = tpu.matmul %1, %2, %cst {dimension_numbers = #tpu.dot_dimension_numbers<[1], [0], [0], [1], [0, 0, 1, 1], [], []>} : vector<16x32xbf16>, vector<32x32xbf16>, vector<16x32xf32> -> vector<16x32xf32>
    %c0_3 = arith.constant 0 : index
    %c0_4 = arith.constant 0 : index
    %4 = vector.load %arg3[%c0_3, %c0_4] : memref<1x32xf32, #tpu.memory_space<vmem>>, vector<1x32xf32>
    %5 = vector.broadcast %4 : vector<1x32xf32> to vector<16x32xf32>
    %6 = arith.addf %3, %5 : vector<16x32xf32>
    %7 = arith.addf %6, %0 : vector<16x32xf32>
    %c0_5 = arith.constant 0 : index
    %c0_6 = arith.constant 0 : index
    %8 = vector.load %arg4[%c0_5, %c0_6] : memref<16x32xf32, #tpu.memory_space<vmem>>, vector<16x32xf32>
    tpu.vector_store %arg4[%c0_5, %c0_6], %7 {strides = array<i32>} : memref<16x32xf32, #tpu.memory_space<vmem>>, vector<16x32xf32>,
    return
  }
  func.func @transform_0(%arg0: i32) -> (i32, i32) {
    %c0_i32 = arith.constant 0 : i32
    %c0_i32_0 = arith.constant 0 : i32
    return %arg0, %c0_i32 : i32, i32
  }
  func.func @transform_1(%arg0: i32) -> (i32, i32) {
    %c0_i32 = arith.constant 0 : i32
    %c0_i32_0 = arith.constant 0 : i32
    %c0_i32_1 = arith.constant 0 : i32
    return %c0_i32, %c0_i32_0 : i32, i32
  }
  func.func @transform_2(%arg0: i32) -> (i32, i32) {
    %c0_i32 = arith.constant 0 : i32
    %c0_i32_0 = arith.constant 0 : i32
    %c0_i32_1 = arith.constant 0 : i32
    return %c0_i32, %c0_i32_0 : i32, i32
  }
  func.func @transform_3(%arg0: i32) -> (i32, i32) {
    %c0_i32 = arith.constant 0 : i32
    %c0_i32_0 = arith.constant 0 : i32
    return %arg0, %c0_i32 : i32, i32
  }
}

module attributes {stable_mosaic.version = 11 : i64} {
  func.func @_residual_linear_kernel(%arg0: i32, %arg1: memref<16x32xf32, #tpu.memory_space<vmem>>, %arg2: memref<32x32xbf16, #tpu.memory_space<vmem>>, %arg3: memref<1x32xf32, #tpu.memory_space<vmem>>, %arg4: memref<16x32xf32, #tpu.memory_space<vmem>>) attributes {dimension_semantics = [#tpu.dimension_semantics<parallel>], iteration_bounds = array<i64: 1>, scalar_prefetch = 0 : i64, scratch_operands = 0 : i64, tpu.core_type = #tpu.core_type<tc>, window_params = [{transform_indices = @transform_0, window_bounds = array<i64: 16, 32>}, {pipeline_mode = #tpu.pipeline_mode<synchronous>, transform_indices = @transform_1, window_bounds = array<i64: 32, 32>}, {pipeline_mode = #tpu.pipeline_mode<synchronous>, transform_indices = @transform_2, window_bounds = array<i64: 1, 32>}, {transform_indices = @transform_3, window_bounds = array<i64: 16, 32>}]} {
    %c0 = arith.constant 0 : index
    %c0_0 = arith.constant 0 : index
    %0 = vector.load %arg1[%c0, %c0_0] : memref<16x32xf32, #tpu.memory_space<vmem>>, vector<16x32xf32>
    %1 = arith.truncf %0 : vector<16x32xf32> to vector<16x32xbf16>
    %c0_1 = arith.constant 0 : index
    %c0_2 = arith.constant 0 : index
    %2 = vector.load %arg2[%c0_1, %c0_2] : memref<32x32xbf16, #tpu.memory_space<vmem>>, vector<32x32xbf16>
    %cst = arith.constant dense<0.000000e+00> : vector<16x32xf32>
    %3 = tpu.matmul %1, %2, %cst {dimension_numbers = #tpu.dot_dimension_numbers<[1], [0], [0], [1], [0, 0, 1, 1], [], []>} : vector<16x32xbf16>, vector<32x32xbf16>, vector<16x32xf32> -> vector<16x32xf32>
    %c0_3 = arith.constant 0 : index
    %c0_4 = arith.constant 0 : index
    %4 = vector.load %arg3[%c0_3, %c0_4] : memref<1x32xf32, #tpu.memory_space<vmem>>, vector<1x32xf32>
    %5 = vector.broadcast %4 : vector<1x32xf32> to vector<16x32xf32>
    %6 = arith.addf %3, %5 : vector<16x32xf32>
    %7 = arith.addf %6, %0 : vector<16x32xf32>
    %c0_5 = arith.constant 0 : index
    %c0_6 = arith.constant 0 : index
    %8 = vector.load %arg4[%c0_5, %c0_6] : memref<16x32xf32, #tpu.memory_space<vmem>>, vector<16x32xf32>
    tpu.vector_store %arg4[%c0_5, %c0_6], %7 {strides = array<i32>} : memref<16x32xf32, #tpu.memory_space<vmem>>, vector<16x32xf32>,
    return
  }
  func.func @transform_0(%arg0: i32) -> (i32, i32) {
    %c0_i32 = arith.constant 0 : i32
    %c0_i32_0 = arith.constant 0 : i32
    return %arg0, %c0_i32 : i32, i32
  }
  func.func @transform_1(%arg0: i32) -> (i32, i32) {
    %c0_i32 = arith.constant 0 : i32
    %c0_i32_0 = arith.constant 0 : i32
    %c0_i32_1 = arith.constant 0 : i32
    return %c0_i32, %c0_i32_0 : i32, i32
  }
  func.func @transform_2(%arg0: i32) -> (i32, i32) {
    %c0_i32 = arith.constant 0 : i32
    %c0_i32_0 = arith.constant 0 : i32
    %c0_i32_1 = arith.constant 0 : i32
    return %c0_i32, %c0_i32_0 : i32, i32
  }
  func.func @transform_3(%arg0: i32) -> (i32, i32) {
    %c0_i32 = arith.constant 0 : i32
    %c0_i32_0 = arith.constant 0 : i32
    return %arg0, %c0_i32 : i32, i32
  }
}

</mosaic_0001>

<llo_original>
// kernel: tpu_custom_call.1
$region0: #{tpu_custom_call.1}
  #allocation0 [shape = 'u32[]', space=smem, size = 0x4, offset = 0x4, fixed_abs, tag = 'smem constant byte address 0x4 - core index']
  #allocation1 [shape = 'u32[144,128]{1,0:T(1,128)}', space=vmem, size = 0x12000, scoped, tag = 'internal scratch']
  %s0 = inlined_call_operand.hbm [shape: f32[16,32], index: 0, kind: input, shape index: {}]
  %s1 = inlined_call_operand.hbm [shape: bf16[32,32], index: 1, kind: input, shape index: {}]
  %s2 = inlined_call_operand.vmem [shape: f32[1,32], index: 2, kind: input, shape index: {}]
  %s3 = inlined_call_operand.hbm [shape: f32[16,32], index: 3, kind: output, shape index: {}]
  %s4 = sld [smem:[#allocation0]]
  $region30: #{tpu_custom_call.1} parent=0
    _
  %s6 = ssub.s32 1, %s4
  %s7 = scalar_select 0, %s6, %s4
  $region1: #{tpu_custom_call.1} parent=0
    #allocation2 [shape = 'u8[8192]{0}', space=vmem, size = 0x2000, scoped, tag = 'input window, operand 0, single buffered']
    #allocation3 [shape = 's32[1]{0}', space=sflag, size = 0x4, scoped, tag = 'scoped memory for tpu_custom_call.1']
    #allocation4 [shape = 's32[1]{0}', space=sflag, size = 0x4, scoped, tag = 'scoped memory for tpu_custom_call.1']
    #allocation5 [shape = 'u8[8192]{0}', space=vmem, size = 0x2000, scoped, tag = 'input window, operand 1, single buffered']
    #allocation6 [shape = 's32[1]{0}', space=sflag, size = 0x4, scoped, tag = 'scoped memory for tpu_custom_call.1']
    #allocation7 [shape = 'u8[8192]{0}', space=vmem, size = 0x2000, scoped, tag = 'output window, operand 0, single buffered']
    %8 = vsyncpa [#allocation3], 0
    %9 = vsyncpa [#allocation6], 0
    %10 = vsyncpa [#allocation4], 0
    // Predicated region
    $region2: #{tpu_custom_call.1} parent=1 // pred_check
      _
    $region3: #{tpu_custom_call.1} parent=1 // pred_check_branch
      %12 = sbr.rel (0) target = $region5
    $region4: #{tpu_custom_call.1} parent=1 // pred_region
      %s14 = ssub.s32 256, 256
      %15 = vsyncadd [#allocation3], %s14
      %s16 = sshll.u32 [#allocation2], 4
      %s17 = int_to_ptr.vmem [resolvable:$true] %s16
      %22 = dma.hbm_to_vmem [thread:$0]  %s0, 256, %s17, [#allocation3], 128, 128, 8
    $region5: #{tpu_custom_call.1} parent=1 // pred_fallthru
      _
    // Predicated region
    $region6: #{tpu_custom_call.1} parent=1 // pred_check
      _
    $region7: #{tpu_custom_call.1} parent=1 // pred_check_branch
      %24 = sbr.rel (0) target = $region9
    $region8: #{tpu_custom_call.1} parent=1 // pred_region
      %s26 = ssub.s32 256, 256
      %27 = vsyncadd [#allocation6], %s26
      %s28 = sshll.u32 [#allocation5], 4
      %s29 = int_to_ptr.vmem [resolvable:$true] %s28
      %34 = dma.hbm_to_vmem [thread:$0]  %s1, 256, %s29, [#allocation6], 64, 64, 4
    $region9: #{tpu_custom_call.1} parent=1 // pred_fallthru
      _
    // Predicated region
    $region10: #{tpu_custom_call.1} parent=1 // pred_check
      _
    $region11: #{tpu_custom_call.1} parent=1 // pred_check_branch
      %36 = sbr.rel (0) target = $region13
    $region12: #{tpu_custom_call.1} parent=1 // pred_region
      _
    $region13: #{tpu_custom_call.1} parent=1 // pred_fallthru
      _
    // Predicated region
    $region14: #{tpu_custom_call.1} parent=1 // pred_check
      _
    $region15: #{tpu_custom_call.1} parent=1 // pred_check_branch
      %38 = sbr.rel (0) target = $region17
    $region16: #{tpu_custom_call.1} parent=1 // pred_region
      %39 = dma.done [#allocation3], 256
    $region17: #{tpu_custom_call.1} parent=1 // pred_fallthru
      _
    // Predicated region
    $region18: #{tpu_custom_call.1} parent=1 // pred_check
      _
    $region19: #{tpu_custom_call.1} parent=1 // pred_check_branch
      %41 = sbr.rel (0) target = $region21
    $region20: #{tpu_custom_call.1} parent=1 // pred_region
      %42 = dma.done [#allocation6], 256
    $region21: #{tpu_custom_call.1} parent=1 // pred_fallthru
      _
    %v44 = vld [vmem:[#allocation2] sm:$0xff]
    %v45 = vld [vmem:[#allocation2 + $0x8] sm:$0xff]
    %v46 = vpack.c.bf16 %v45, %v44
    %v47 = vld [vmem:[#allocation5] sm:$0xf]
    %v48 = vld [vmem:[#allocation5 + $0x4] sm:$0xf]
    %v49 = vld [vmem:[#allocation5 + $0x8] sm:$0xf]
    %v50 = vld [vmem:[#allocation5 + $0xc] sm:$0xf]
    %v51 = vld [vmem:[%s2] sm:$0x1]
    %v53 = vlaneseq
    %v54 = vshrl.u32 %v53, 7
    %v55 = vsub.s32 0, %v54
    %v56 = vrot.slane %v51, %v55
    %v62 = vunpack.c.l.b16 %v47
    %v63 = vunpack.c.l.b16 %v48
    %v64 = vunpack.c.l.b16 %v49
    %v65 = vunpack.c.l.b16 %v50
    %v66 = vpack.c.b16 %v63, %v62
    %v67 = vpack.c.b16 %v65, %v64
    %vm70 = vcmask 261120
    %v72 = vsel %vm70, %v46, 0
    %74 = vmatprep.subr.bf16.mxu0 0
    %75 = vmatpush1.bf16.msra.mxu0 %v66
    %76 = vmatprep.subr.bf16.mxu0 0
    %77 = vmatpush1.bf16.msra.mxu0 %v67
    %78 = vmatprep.subr.bf16.mxu0 0
    %79 = vmatpush1.bf16.msra.mxu0 0
    %80 = vmatprep.subr.bf16.mxu0 0
    %81 = vmatpush1.bf16.msra.mxu0 0
    %82 = vmatprep.subr.bf16.mxu0 0
    %83 = vmatpush1.bf16.msra.mxu0 0
    %84 = vmatprep.subr.bf16.mxu0 0
    %85 = vmatpush1.bf16.msra.mxu0 0
    %86 = vmatprep.subr.bf16.mxu0 0
    %87 = vmatpush1.bf16.msra.mxu0 0
    %88 = vmatprep.subr.bf16.mxu0 0
    %89 = vmatpush1.bf16.msra.mxu0 0
    %90 = vmatprep.subr.bf16.mxu0 0
    %91 = vmatpush1.bf16.msra.mxu0 0
    %92 = vmatprep.subr.bf16.mxu0 0
    %93 = vmatpush1.bf16.msra.mxu0 0
    %94 = vmatprep.subr.bf16.mxu0 0
    %95 = vmatpush1.bf16.msra.mxu0 0
    %96 = vmatprep.subr.bf16.mxu0 0
    %97 = vmatpush1.bf16.msra.mxu0 0
    %98 = vmatprep.subr.bf16.mxu0 0
    %99 = vmatpush1.bf16.msra.mxu0 0
    %100 = vmatprep.subr.bf16.mxu0 0
    %101 = vmatpush1.bf16.msra.mxu0 0
    %102 = vmatprep.subr.bf16.mxu0 0
    %103 = vmatpush1.bf16.msra.mxu0 0
    %104 = vmatprep.subr.bf16.mxu0 0
    %105 = vmatpush1.bf16.msra.mxu0 0
    %106 = vmatprep.mubr.bf16.mxu0 0
    %107 = vmatmul.mubr.bf16.gmra.mrb[0].mxu0 %v72
    %v108 = vpop.f32.mrb[0].mxu0
    %v109 = vadd.f32 %v56, %v108
    %v110 = vpop.f32.mrb[0].mxu0
    %v111 = vpop.f32.mrb[0].mxu0
    %v112 = vadd.f32 %v56, %v111
    %v113 = vpop.f32.mrb[0].mxu0
    %114 = vdwg.mxu0
    %v115 = vadd.f32 %v109, %v44
    %v116 = vadd.f32 %v112, %v45
    %117 = vst.msk [vmem:[#allocation7] sm:$0xff] %vm70, %v115
    %118 = vst.msk [vmem:[#allocation7 + $0x8] sm:$0xff] %vm70, %v116
    // Predicated region
    $region22: #{tpu_custom_call.1} parent=1 // pred_check
      _
    $region23: #{tpu_custom_call.1} parent=1 // pred_check_branch
      %120 = sbr.rel (0) target = $region25
    $region24: #{tpu_custom_call.1} parent=1 // pred_region
      %s122 = ssub.s32 256, 256
      %123 = vsyncadd [#allocation4], %s122
      %s124 = sshll.u32 [#allocation7], 4
      %s125 = int_to_ptr.vmem [resolvable:$true] %s124
      %130 = dma.vmem_to_hbm [thread:$0]  %s125, 256, %s3, [#allocation4], 128, 128, 8
    $region25: #{tpu_custom_call.1} parent=1 // pred_fallthru
      _
    // Predicated region
    $region26: #{tpu_custom_call.1} parent=1 // pred_check
      _
    $region27: #{tpu_custom_call.1} parent=1 // pred_check_branch
      %132 = sbr.rel (0) target = $region29
    $region28: #{tpu_custom_call.1} parent=1 // pred_region
      %133 = dma.done [#allocation4], 256
    $region29: #{tpu_custom_call.1} parent=1 // pred_fallthru
      _
    %134 = vsyncpa [#allocation3], 1
    %135 = vsyncpa [#allocation6], 1
    %136 = vsyncpa [#allocation4], 1

// kernel: tpu_custom_call.1
$region0: #{tpu_custom_call.1}
  #allocation0 [shape = 'u32[]', space=smem, size = 0x4, offset = 0x4, fixed_abs, tag = 'smem constant byte address 0x4 - core index']
  #allocation1 [shape = 'u32[144,128]{1,0:T(1,128)}', space=vmem, size = 0x12000, scoped, tag = 'internal scratch']
  %s0 = inlined_call_operand.hbm [shape: f32[16,32], index: 0, kind: input, shape index: {}]
  %s1 = inlined_call_operand.hbm [shape: bf16[32,32], index: 1, kind: input, shape index: {}]
  %s2 = inlined_call_operand.vmem [shape: f32[1,32], index: 2, kind: input, shape index: {}]
  %s3 = inlined_call_operand.hbm [shape: f32[16,32], index: 3, kind: output, shape index: {}]
  %s4 = sld [smem:[#allocation0]]
  $region30: #{tpu_custom_call.1} parent=0
    _
  %s6 = ssub.s32 1, %s4
  %s7 = scalar_select 0, %s6, %s4
  $region1: #{tpu_custom_call.1} parent=0
    #allocation2 [shape = 'u8[8192]{0}', space=vmem, size = 0x2000, scoped, tag = 'input window, operand 0, single buffered']
    #allocation3 [shape = 's32[1]{0}', space=sflag, size = 0x4, scoped, tag = 'scoped memory for tpu_custom_call.1']
    #allocation4 [shape = 's32[1]{0}', space=sflag, size = 0x4, scoped, tag = 'scoped memory for tpu_custom_call.1']
    #allocation5 [shape = 'u8[8192]{0}', space=vmem, size = 0x2000, scoped, tag = 'input window, operand 1, single buffered']
    #allocation6 [shape = 's32[1]{0}', space=sflag, size = 0x4, scoped, tag = 'scoped memory for tpu_custom_call.1']
    #allocation7 [shape = 'u8[8192]{0}', space=vmem, size = 0x2000, scoped, tag = 'output window, operand 0, single buffered']
    %8 = vsyncpa [#allocation3], 0
    %9 = vsyncpa [#allocation6], 0
    %10 = vsyncpa [#allocation4], 0
    // Predicated region
    $region2: #{tpu_custom_call.1} parent=1 // pred_check
      _
    $region3: #{tpu_custom_call.1} parent=1 // pred_check_branch
      %12 = sbr.rel (0) target = $region5
    $region4: #{tpu_custom_call.1} parent=1 // pred_region
      %s14 = ssub.s32 256, 256
      %15 = vsyncadd [#allocation3], %s14
      %s16 = sshll.u32 [#allocation2], 4
      %s17 = int_to_ptr.vmem [resolvable:$true] %s16
      %22 = dma.hbm_to_vmem [thread:$0]  %s0, 256, %s17, [#allocation3], 128, 128, 8
    $region5: #{tpu_custom_call.1} parent=1 // pred_fallthru
      _
    // Predicated region
    $region6: #{tpu_custom_call.1} parent=1 // pred_check
      _
    $region7: #{tpu_custom_call.1} parent=1 // pred_check_branch
      %24 = sbr.rel (0) target = $region9
    $region8: #{tpu_custom_call.1} parent=1 // pred_region
      %s26 = ssub.s32 256, 256
      %27 = vsyncadd [#allocation6], %s26
      %s28 = sshll.u32 [#allocation5], 4
      %s29 = int_to_ptr.vmem [resolvable:$true] %s28
      %34 = dma.hbm_to_vmem [thread:$0]  %s1, 256, %s29, [#allocation6], 64, 64, 4
    $region9: #{tpu_custom_call.1} parent=1 // pred_fallthru
      _
    // Predicated region
    $region10: #{tpu_custom_call.1} parent=1 // pred_check
      _
    $region11: #{tpu_custom_call.1} parent=1 // pred_check_branch
      %36 = sbr.rel (0) target = $region13
    $region12: #{tpu_custom_call.1} parent=1 // pred_region
      _
    $region13: #{tpu_custom_call.1} parent=1 // pred_fallthru
      _
    // Predicated region
    $region14: #{tpu_custom_call.1} parent=1 // pred_check
      _
    $region15: #{tpu_custom_call.1} parent=1 // pred_check_branch
      %38 = sbr.rel (0) target = $region17
    $region16: #{tpu_custom_call.1} parent=1 // pred_region
      %39 = dma.done [#allocation3], 256
    $region17: #{tpu_custom_call.1} parent=1 // pred_fallthru
      _
    // Predicated region
    $region18: #{tpu_custom_call.1} parent=1 // pred_check
      _
    $region19: #{tpu_custom_call.1} parent=1 // pred_check_branch
      %41 = sbr.rel (0) target = $region21
    $region20: #{tpu_custom_call.1} parent=1 // pred_region
      %42 = dma.done [#allocation6], 256
    $region21: #{tpu_custom_call.1} parent=1 // pred_fallthru
      _
    %v44 = vld [vmem:[#allocation2] sm:$0xff]
    %v45 = vld [vmem:[#allocation2 + $0x8] sm:$0xff]
    %v46 = vpack.c.bf16 %v45, %v44
    %v47 = vld [vmem:[#allocation5] sm:$0xf]
    %v48 = vld [vmem:[#allocation5 + $0x4] sm:$0xf]
    %v49 = vld [vmem:[#allocation5 + $0x8] sm:$0xf]
    %v50 = vld [vmem:[#allocation5 + $0xc] sm:$0xf]
    %v51 = vld [vmem:[%s2] sm:$0x1]
    %v53 = vlaneseq
    %v54 = vshrl.u32 %v53, 7
    %v55 = vsub.s32 0, %v54
    %v56 = vrot.slane %v51, %v55
    %v62 = vunpack.c.l.b16 %v47
    %v63 = vunpack.c.l.b16 %v48
    %v64 = vunpack.c.l.b16 %v49
    %v65 = vunpack.c.l.b16 %v50
    %v66 = vpack.c.b16 %v63, %v62
    %v67 = vpack.c.b16 %v65, %v64
    %vm70 = vcmask 261120
    %v72 = vsel %vm70, %v46, 0
    %74 = vmatprep.subr.bf16.mxu0 0
    %75 = vmatpush1.bf16.msra.mxu0 %v66
    %76 = vmatprep.subr.bf16.mxu0 0
    %77 = vmatpush1.bf16.msra.mxu0 %v67
    %78 = vmatprep.subr.bf16.mxu0 0
    %79 = vmatpush1.bf16.msra.mxu0 0
    %80 = vmatprep.subr.bf16.mxu0 0
    %81 = vmatpush1.bf16.msra.mxu0 0
    %82 = vmatprep.subr.bf16.mxu0 0
    %83 = vmatpush1.bf16.msra.mxu0 0
    %84 = vmatprep.subr.bf16.mxu0 0
    %85 = vmatpush1.bf16.msra.mxu0 0
    %86 = vmatprep.subr.bf16.mxu0 0
    %87 = vmatpush1.bf16.msra.mxu0 0
    %88 = vmatprep.subr.bf16.mxu0 0
    %89 = vmatpush1.bf16.msra.mxu0 0
    %90 = vmatprep.subr.bf16.mxu0 0
    %91 = vmatpush1.bf16.msra.mxu0 0
    %92 = vmatprep.subr.bf16.mxu0 0
    %93 = vmatpush1.bf16.msra.mxu0 0
    %94 = vmatprep.subr.bf16.mxu0 0
    %95 = vmatpush1.bf16.msra.mxu0 0
    %96 = vmatprep.subr.bf16.mxu0 0
    %97 = vmatpush1.bf16.msra.mxu0 0
    %98 = vmatprep.subr.bf16.mxu0 0
    %99 = vmatpush1.bf16.msra.mxu0 0
    %100 = vmatprep.subr.bf16.mxu0 0
    %101 = vmatpush1.bf16.msra.mxu0 0
    %102 = vmatprep.subr.bf16.mxu0 0
    %103 = vmatpush1.bf16.msra.mxu0 0
    %104 = vmatprep.subr.bf16.mxu0 0
    %105 = vmatpush1.bf16.msra.mxu0 0
    %106 = vmatprep.mubr.bf16.mxu0 0
    %107 = vmatmul.mubr.bf16.gmra.mrb[0].mxu0 %v72
    %v108 = vpop.f32.mrb[0].mxu0
    %v109 = vadd.f32 %v56, %v108
    %v110 = vpop.f32.mrb[0].mxu0
    %v111 = vpop.f32.mrb[0].mxu0
    %v112 = vadd.f32 %v56, %v111
    %v113 = vpop.f32.mrb[0].mxu0
    %114 = vdwg.mxu0
    %v115 = vadd.f32 %v109, %v44
    %v116 = vadd.f32 %v112, %v45
    %117 = vst.msk [vmem:[#allocation7] sm:$0xff] %vm70, %v115
    %118 = vst.msk [vmem:[#allocation7 + $0x8] sm:$0xff] %vm70, %v116
    // Predicated region
    $region22: #{tpu_custom_call.1} parent=1 // pred_check
      _
    $region23: #{tpu_custom_call.1} parent=1 // pred_check_branch
      %120 = sbr.rel (0) target = $region25
    $region24: #{tpu_custom_call.1} parent=1 // pred_region
      %s122 = ssub.s32 256, 256
      %123 = vsyncadd [#allocation4], %s122
      %s124 = sshll.u32 [#allocation7], 4
      %s125 = int_to_ptr.vmem [resolvable:$true] %s124
      %130 = dma.vmem_to_hbm [thread:$0]  %s125, 256, %s3, [#allocation4], 128, 128, 8
    $region25: #{tpu_custom_call.1} parent=1 // pred_fallthru
      _
    // Predicated region
    $region26: #{tpu_custom_call.1} parent=1 // pred_check
      _
    $region27: #{tpu_custom_call.1} parent=1 // pred_check_branch
      %132 = sbr.rel (0) target = $region29
    $region28: #{tpu_custom_call.1} parent=1 // pred_region
      %133 = dma.done [#allocation4], 256
    $region29: #{tpu_custom_call.1} parent=1 // pred_fallthru
      _
    %134 = vsyncpa [#allocation3], 1
    %135 = vsyncpa [#allocation6], 1
    %136 = vsyncpa [#allocation4], 1

</llo_original>
